<compile_context>
chip_gen: v7x
topology: tpu7x:2x2x1
jax: 0.10.0
libtpu: 0.0.40
codegen_flags: <defaults>
</compile_context>

<pallas_src>
import numpy as np
import jax
import jax.numpy as jnp
from jax.experimental import pallas as pl
from jax.experimental.pallas import tpu as pltpu

NUM_NODES = 34
IN_FEATS = 34          # inputs = torch.eye(num_nodes)
HIDDEN = 16
NUM_CLASSES = 2

N_PAD = 48             # node dim: next multiple of 8 above 34 (sublane aligned)
H_PAD = 128            # hidden dim padded to one lane tile
C_PAD = 128            # class dim padded to one lane tile (lane-dense output)
B_ROWS = 8             # merged-bias operand rows (sublane aligned)

EDGE_LIST = [
    (1, 0), (2, 0), (2, 1), (3, 0), (3, 1), (3, 2), (4, 0), (5, 0), (6, 0),
    (6, 4), (6, 5), (7, 0), (7, 1), (7, 2), (7, 3), (8, 0), (8, 2), (9, 2),
    (10, 0), (10, 4), (10, 5), (11, 0), (12, 0), (12, 3), (13, 0), (13, 1),
    (13, 2), (13, 3), (16, 5), (16, 6), (17, 0), (17, 1), (19, 0), (19, 1),
    (21, 0), (21, 1), (25, 23), (25, 24), (27, 2), (27, 23), (27, 24),
    (28, 2), (29, 23), (29, 26), (30, 1), (30, 8), (31, 0), (31, 24),
    (31, 25), (31, 28), (32, 2), (32, 8), (32, 14), (32, 15), (32, 18),
    (32, 20), (32, 22), (32, 23), (32, 29), (32, 30), (32, 31), (33, 8),
    (33, 9), (33, 13), (33, 14), (33, 15), (33, 18), (33, 19), (33, 20),
    (33, 22), (33, 23), (33, 26), (33, 27), (33, 28), (33, 29), (33, 30),
    (33, 31), (33, 32),
]


def build_adjacency():
    """Dense adjacency: A[dst, src] = 1 for every directed edge, both ways."""
    src, dst = zip(*EDGE_LIST)
    src = np.asarray(src)
    dst = np.asarray(dst)
    a = np.zeros((NUM_NODES, NUM_NODES), dtype=np.float32)
    a[dst, src] = 1.0   # g.add_edges(src, dst): msg flows src -> dst
    a[src, dst] = 1.0   # g.add_edges(dst, src): reverse direction
    return a


def gcn_kernel(a_ref, x_ref, w1t_ref, bias_ref, w2t_ref, out_ref):
    a = a_ref[...]                                               # [48, 48] bf16
    # layer 1: h1 = relu( A @ (X @ W1^T) + b1 )   (aggregation reassociated:
    # (A @ X) @ W1^T == A @ (X @ W1^T); both tiny dots run on the MXU here)
    xw1 = jnp.dot(x_ref[...], w1t_ref[...],
                  preferred_element_type=jnp.float32)            # [48, 128] f32
    h1 = jnp.dot(a, xw1.astype(jnp.bfloat16),
                 preferred_element_type=jnp.float32)             # [48, 128] f32
    h1 = jnp.maximum(h1 + bias_ref[0:1, :], 0.0)
    # NOTE: no row-masking of padded h1 rows is needed — the padded columns of
    # A (j >= 34) are zero, so those rows can never contaminate A @ h1.
    # layer 2: out = (A @ h1) @ W2^T + b2   (bf16 MXU inputs, f32 accumulation)
    agg2 = jnp.dot(a, h1.astype(jnp.bfloat16),
                   preferred_element_type=jnp.float32)           # [48, 128] f32
    out_ref[...] = (
        jnp.dot(agg2.astype(jnp.bfloat16), w2t_ref[...],
                preferred_element_type=jnp.float32)
        + bias_ref[1:2, :]
    )


def _pad2d(x, rows, cols, dtype=jnp.float32):
    x = jnp.asarray(x, jnp.float32)
    return jnp.pad(x, ((0, rows - x.shape[0]), (0, cols - x.shape[1]))).astype(dtype)


def make_gcn_forward(adj, w1, b1, w2, b2):
    """Pad / cast all constants once at init; return a jitted forward(x)."""
    a_p = _pad2d(adj, N_PAD, N_PAD, jnp.bfloat16)          # 0/1 -> exact in bf16
    w1t_p = _pad2d(jnp.asarray(w1, jnp.float32).T, N_PAD, H_PAD, jnp.bfloat16)
    w2t_p = _pad2d(jnp.asarray(w2, jnp.float32).T, H_PAD, C_PAD, jnp.bfloat16)
    # merged biases: row 0 = b1 (padded to 128 lanes), row 1 = b2, rest zero
    bias_p = jnp.zeros((B_ROWS, H_PAD), jnp.float32)
    bias_p = bias_p.at[0, :HIDDEN].set(jnp.asarray(b1, jnp.float32))
    bias_p = bias_p.at[1, :NUM_CLASSES].set(jnp.asarray(b2, jnp.float32))

    call = pl.pallas_call(
        gcn_kernel,
        out_shape=jax.ShapeDtypeStruct((N_PAD, C_PAD), jnp.float32),
        # gridless: whole (tiny, <100 KiB) operands resident in VMEM; no grid,
        # no dimension_semantics, no pipelining machinery (latency-bound).
        in_specs=[pl.BlockSpec(memory_space=pltpu.MemorySpace.VMEM)
                  for _ in range(5)],
        out_specs=pl.BlockSpec(memory_space=pltpu.MemorySpace.VMEM),
        cost_estimate=pl.CostEstimate(
            flops=2 * N_PAD * N_PAD * H_PAD * 3 + 2 * N_PAD * H_PAD * C_PAD,
            transcendentals=0,
            bytes_accessed=(N_PAD * N_PAD * 2 + N_PAD * H_PAD + H_PAD * C_PAD) * 2
            + (B_ROWS * H_PAD + N_PAD * C_PAD) * 4,
        ),
    )

    @jax.jit
    def forward(x):
        # Only a pad + cast remains in the wrapper (fused by XLA); bf16 is
        # exact for the 0/1 one-hot / identity inputs used by this model.
        x_p = _pad2d(x, N_PAD, N_PAD, jnp.bfloat16)
        out_p = call(a_p, x_p, w1t_p, bias_p, w2t_p)
        return out_p[:NUM_NODES, :NUM_CLASSES]

    return forward


def init_params(key):
    """Deterministic nn.Linear-style init (uniform +/- 1/sqrt(fan_in))."""
    k1, k2, k3, k4 = jax.random.split(key, 4)
    bound1 = 1.0 / np.sqrt(IN_FEATS)
    bound2 = 1.0 / np.sqrt(HIDDEN)
    w1 = jax.random.uniform(k1, (HIDDEN, IN_FEATS), jnp.float32, -bound1, bound1)
    b1 = jax.random.uniform(k2, (HIDDEN,), jnp.float32, -bound1, bound1)
    w2 = jax.random.uniform(k3, (NUM_CLASSES, HIDDEN), jnp.float32, -bound2, bound2)
    b2 = jax.random.uniform(k4, (NUM_CLASSES,), jnp.float32, -bound2, bound2)
    return w1, b1, w2, b2


if __name__ == "__main__":
    key = jax.random.PRNGKey(0)
    w1, b1, w2, b2 = init_params(key)

    adj = jnp.asarray(build_adjacency())
    x = jnp.eye(NUM_NODES, dtype=jnp.float32)   # inputs = torch.eye(34)

    forward = make_gcn_forward(adj, w1, b1, w2, b2)
    out = jax.block_until_ready(forward(x))

    # pure-JAX f32 reference; kernel uses bf16 MXU inputs with f32 accumulation
    # (A and the identity X cast exactly), so tolerances are loosened for the
    # bf16-rounded weights / activations.
    h_ref = jnp.maximum(adj @ x @ w1.T + b1, 0.0)
    ref = adj @ h_ref @ w2.T + b2
    np.testing.assert_allclose(np.asarray(out), np.asarray(ref), rtol=5e-2, atol=5e-2)

    assert out.shape == (NUM_NODES, NUM_CLASSES)
    print("KERNEL_OK")
</pallas_src>

<mosaic_0001>
module attributes {stable_mosaic.version = 11 : i64} {
  func.func @gcn_kernel(%arg0: memref<48x48xbf16, #tpu.memory_space<vmem>>, %arg1: memref<48x48xbf16, #tpu.memory_space<vmem>>, %arg2: memref<48x128xbf16, #tpu.memory_space<vmem>>, %arg3: memref<8x128xf32, #tpu.memory_space<vmem>>, %arg4: memref<128x128xbf16, #tpu.memory_space<vmem>>, %arg5: memref<48x128xf32, #tpu.memory_space<vmem>>) attributes {dimension_semantics = [], scalar_prefetch = 0 : i64, scratch_operands = 0 : i64, tpu.core_type = #tpu.core_type<tc>} {
    %c0 = arith.constant 0 : index
    %c0_0 = arith.constant 0 : index
    %0 = vector.load %arg0[%c0, %c0_0] : memref<48x48xbf16, #tpu.memory_space<vmem>>, vector<48x48xbf16>
    %c0_1 = arith.constant 0 : index
    %c0_2 = arith.constant 0 : index
    %1 = vector.load %arg1[%c0_1, %c0_2] : memref<48x48xbf16, #tpu.memory_space<vmem>>, vector<48x48xbf16>
    %c0_3 = arith.constant 0 : index
    %c0_4 = arith.constant 0 : index
    %2 = vector.load %arg2[%c0_3, %c0_4] : memref<48x128xbf16, #tpu.memory_space<vmem>>, vector<48x128xbf16>
    %cst = arith.constant dense<0.000000e+00> : vector<48x128xf32>
    %3 = tpu.matmul %1, %2, %cst {dimension_numbers = #tpu.dot_dimension_numbers<[1], [0], [0], [1], [0, 0, 1, 1], [], []>} : vector<48x48xbf16>, vector<48x128xbf16>, vector<48x128xf32> -> vector<48x128xf32>
    %4 = arith.truncf %3 : vector<48x128xf32> to vector<48x128xbf16>
    %cst_5 = arith.constant dense<0.000000e+00> : vector<48x128xf32>
    %5 = tpu.matmul %0, %4, %cst_5 {dimension_numbers = #tpu.dot_dimension_numbers<[1], [0], [0], [1], [0, 0, 1, 1], [], []>} : vector<48x48xbf16>, vector<48x128xbf16>, vector<48x128xf32> -> vector<48x128xf32>
    %c0_6 = arith.constant 0 : index
    %c0_7 = arith.constant 0 : index
    %6 = vector.load %arg3[%c0_6, %c0_7] : memref<8x128xf32, #tpu.memory_space<vmem>>, vector<1x128xf32>
    %7 = vector.broadcast %6 : vector<1x128xf32> to vector<48x128xf32>
    %8 = arith.addf %5, %7 : vector<48x128xf32>
    %cst_8 = arith.constant 0.000000e+00 : f32
    %9 = vector.broadcast %cst_8 : f32 to vector<48x128xf32>
    %10 = arith.maximumf %8, %9 : vector<48x128xf32>
    %11 = arith.truncf %10 : vector<48x128xf32> to vector<48x128xbf16>
    %cst_9 = arith.constant dense<0.000000e+00> : vector<48x128xf32>
    %12 = tpu.matmul %0, %11, %cst_9 {dimension_numbers = #tpu.dot_dimension_numbers<[1], [0], [0], [1], [0, 0, 1, 1], [], []>} : vector<48x48xbf16>, vector<48x128xbf16>, vector<48x128xf32> -> vector<48x128xf32>
    %13 = arith.truncf %12 : vector<48x128xf32> to vector<48x128xbf16>
    %c0_10 = arith.constant 0 : index
    %c0_11 = arith.constant 0 : index
    %14 = vector.load %arg4[%c0_10, %c0_11] : memref<128x128xbf16, #tpu.memory_space<vmem>>, vector<128x128xbf16>
    %cst_12 = arith.constant dense<0.000000e+00> : vector<48x128xf32>
    %15 = tpu.matmul %13, %14, %cst_12 {dimension_numbers = #tpu.dot_dimension_numbers<[1], [0], [0], [1], [0, 0, 1, 1], [], []>} : vector<48x128xbf16>, vector<128x128xbf16>, vector<48x128xf32> -> vector<48x128xf32>
    %c1 = arith.constant 1 : index
    %c0_13 = arith.constant 0 : index
    %16 = vector.load %arg3[%c1, %c0_13] : memref<8x128xf32, #tpu.memory_space<vmem>>, vector<1x128xf32>
    %17 = vector.broadcast %16 : vector<1x128xf32> to vector<48x128xf32>
    %18 = arith.addf %15, %17 : vector<48x128xf32>
    %c0_14 = arith.constant 0 : index
    %c0_15 = arith.constant 0 : index
    %19 = vector.load %arg5[%c0_14, %c0_15] : memref<48x128xf32, #tpu.memory_space<vmem>>, vector<48x128xf32>
    tpu.vector_store %arg5[%c0_14, %c0_15], %18 {strides = array<i32>} : memref<48x128xf32, #tpu.memory_space<vmem>>, vector<48x128xf32>,
    return
  }
}

</mosaic_0001>

<llo_original>
// kernel: forward.1
$region0: #{forward.1}
  #allocation0 [shape = 'u32[]', space=smem, size = 0x4, offset = 0x4, fixed_abs, tag = 'smem constant byte address 0x4 - core index']
  #allocation1 [shape = 'u32[144,128]{1,0:T(1,128)}', space=vmem, size = 0x12000, scoped, tag = 'internal scratch']
  %s0 = inlined_call_operand.vmem [shape: bf16[48,48], index: 0, kind: input, shape index: {}]
  %s1 = inlined_call_operand.vmem [shape: bf16[48,48], index: 1, kind: input, shape index: {}]
  %s2 = inlined_call_operand.vmem [shape: bf16[48,128], index: 2, kind: input, shape index: {}]
  %s3 = inlined_call_operand.vmem [shape: f32[8,128], index: 3, kind: input, shape index: {}]
  %s4 = inlined_call_operand.vmem [shape: bf16[128,128], index: 4, kind: input, shape index: {}]
  %s5 = inlined_call_operand.vmem [shape: f32[48,128], index: 5, kind: output, shape index: {}]
  %s6 = sld [smem:[#allocation0]]
  $region30: #{forward.1} parent=0
    _
  %s8 = ssub.s32 1, %s6
  %s9 = scalar_select 0, %s8, %s6
  // Predicated region
  $region2: #{forward.1} parent=0 // pred_check
    _
  $region3: #{forward.1} parent=0 // pred_check_branch
    %11 = sbr.rel (0) target = $region5
  $region4: #{forward.1} parent=0 // pred_region
    _
  $region5: #{forward.1} parent=0 // pred_fallthru
    _
  // Predicated region
  $region6: #{forward.1} parent=0 // pred_check
    _
  $region7: #{forward.1} parent=0 // pred_check_branch
    %13 = sbr.rel (0) target = $region9
  $region8: #{forward.1} parent=0 // pred_region
    _
  $region9: #{forward.1} parent=0 // pred_fallthru
    _
  // Predicated region
  $region10: #{forward.1} parent=0 // pred_check
    _
  $region11: #{forward.1} parent=0 // pred_check_branch
    %15 = sbr.rel (0) target = $region13
  $region12: #{forward.1} parent=0 // pred_region
    _
  $region13: #{forward.1} parent=0 // pred_fallthru
    _
  // Predicated region
  $region14: #{forward.1} parent=0 // pred_check
    _
  $region15: #{forward.1} parent=0 // pred_check_branch
    %17 = sbr.rel (0) target = $region17
  $region16: #{forward.1} parent=0 // pred_region
    _
  $region17: #{forward.1} parent=0 // pred_fallthru
    _
  // Predicated region
  $region18: #{forward.1} parent=0 // pred_check
    _
  $region19: #{forward.1} parent=0 // pred_check_branch
    %19 = sbr.rel (0) target = $region21
  $region20: #{forward.1} parent=0 // pred_region
    _
  $region21: #{forward.1} parent=0 // pred_fallthru
    _
  %v21 = vld [vmem:[%s0] sm:$0xf]
  %v22 = vld [vmem:[%s0 + $0x4] sm:$0xf]
  %v23 = vld [vmem:[%s0 + $0x8] sm:$0xf]
  %v24 = vld [vmem:[%s0 + $0xc] sm:$0xf]
  %v25 = vld [vmem:[%s0 + $0x10] sm:$0xf]
  %v26 = vld [vmem:[%s0 + $0x14] sm:$0xf]
  %v27 = vld [vmem:[%s1] sm:$0xf]
  %v28 = vld [vmem:[%s1 + $0x4] sm:$0xf]
  %v29 = vld [vmem:[%s1 + $0x8] sm:$0xf]
  %v30 = vld [vmem:[%s1 + $0xc] sm:$0xf]
  %v31 = vld [vmem:[%s1 + $0x10] sm:$0xf]
  %v32 = vld [vmem:[%s1 + $0x14] sm:$0xf]
  %v33 = vld [vmem:[%s2] sm:$0xf]
  %v34 = vld [vmem:[%s2 + $0x4] sm:$0xf]
  %v35 = vld [vmem:[%s2 + $0x8] sm:$0xf]
  %v36 = vld [vmem:[%s2 + $0xc] sm:$0xf]
  %v37 = vld [vmem:[%s2 + $0x10] sm:$0xf]
  %v38 = vld [vmem:[%s2 + $0x14] sm:$0xf]
  %v45 = vunpack.c.l.b16 %v27
  %v46 = vunpack.c.l.b16 %v28
  %v47 = vunpack.c.l.b16 %v29
  %v48 = vunpack.c.l.b16 %v30
  %v49 = vunpack.c.l.b16 %v31
  %v50 = vunpack.c.l.b16 %v32
  %v51 = vpack.c.b16 %v46, %v45
  %v52 = vpack.c.b16 %v48, %v47
  %v53 = vpack.c.b16 %v50, %v49
  %v60 = vunpack.c.l.b16 %v33
  %v61 = vunpack.c.l.b16 %v34
  %v62 = vunpack.c.l.b16 %v35
  %v63 = vunpack.c.l.b16 %v36
  %v64 = vunpack.c.l.b16 %v37
  %v65 = vunpack.c.l.b16 %v38
  %v66 = vpack.c.b16 %v61, %v60
  %v67 = vpack.c.b16 %v63, %v62
  %v68 = vpack.c.b16 %v65, %v64
  %vm72 = vcmask 392192
  %v74 = vsel %vm72, %v51, 0
  %v77 = vsel %vm72, %v52, 0
  %v80 = vsel %vm72, %v53, 0
  %82 = vmatprep.subr.bf16.mxu0 0
  %83 = vmatpush1.bf16.msra.mxu0 %v66
  %84 = vmatprep.subr.bf16.mxu0 0
  %85 = vmatpush1.bf16.msra.mxu0 %v67
  %86 = vmatprep.subr.bf16.mxu0 0
  %87 = vmatpush1.bf16.msra.mxu0 %v68
  %88 = vmatprep.subr.bf16.mxu0 0
  %89 = vmatpush1.bf16.msra.mxu0 0
  %90 = vmatprep.subr.bf16.mxu0 0
  %91 = vmatpush1.bf16.msra.mxu0 0
  %92 = vmatprep.subr.bf16.mxu0 0
  %93 = vmatpush1.bf16.msra.mxu0 0
  %94 = vmatprep.subr.bf16.mxu0 0
  %95 = vmatpush1.bf16.msra.mxu0 0
  %96 = vmatprep.subr.bf16.mxu0 0
  %97 = vmatpush1.bf16.msra.mxu0 0
  %98 = vmatprep.subr.bf16.mxu0 0
  %99 = vmatpush1.bf16.msra.mxu0 0
  %100 = vmatprep.subr.bf16.mxu0 0
  %101 = vmatpush1.bf16.msra.mxu0 0
  %102 = vmatprep.subr.bf16.mxu0 0
  %103 = vmatpush1.bf16.msra.mxu0 0
  %104 = vmatprep.subr.bf16.mxu0 0
  %105 = vmatpush1.bf16.msra.mxu0 0
  %106 = vmatprep.subr.bf16.mxu0 0
  %107 = vmatpush1.bf16.msra.mxu0 0
  %108 = vmatprep.subr.bf16.mxu0 0
  %109 = vmatpush1.bf16.msra.mxu0 0
  %110 = vmatprep.subr.bf16.mxu0 0
  %111 = vmatpush1.bf16.msra.mxu0 0
  %112 = vmatprep.subr.bf16.mxu0 0
  %113 = vmatpush1.bf16.msra.mxu0 0
  %114 = vmatprep.mubr.bf16.mxu0 0
  %115 = vmatmul.mubr.bf16.gmra.mrb[0].mxu0 %v74
  %v116 = vpop.f32.mrb[0].mxu0
  %v117 = vadd.f32 0.0, %v116
  %v118 = vpop.f32.mrb[0].mxu0
  %v119 = vpop.f32.mrb[0].mxu0
  %v120 = vadd.f32 0.0, %v119
  %v121 = vpop.f32.mrb[0].mxu0
  %122 = vmatprep.mubr.bf16.mxu0 0
  %123 = vmatmul.mubr.bf16.gmra.mrb[0].mxu0 %v77
  %v124 = vpop.f32.mrb[0].mxu0
  %v125 = vadd.f32 0.0, %v124
  %v126 = vpop.f32.mrb[0].mxu0
  %v127 = vpop.f32.mrb[0].mxu0
  %v128 = vadd.f32 0.0, %v127
  %v129 = vpop.f32.mrb[0].mxu0
  %130 = vmatprep.mubr.bf16.mxu0 0
  %131 = vmatmul.mubr.bf16.gmra.mrb[0].mxu0 %v80
  %v132 = vpop.f32.mrb[0].mxu0
  %v133 = vadd.f32 0.0, %v132
  %v134 = vpop.f32.mrb[0].mxu0
  %v135 = vpop.f32.mrb[0].mxu0
  %v136 = vadd.f32 0.0, %v135
  %v137 = vpop.f32.mrb[0].mxu0
  %138 = vdwg.mxu0
  %v139 = vpack.c.bf16 %v120, %v117
  %v140 = vpack.c.bf16 %v128, %v125
  %v141 = vpack.c.bf16 %v136, %v133
  %v142 = vld [vmem:[%s3] sm:$0x1]
  %v143 = vlaneseq
  %v144 = vshrl.u32 %v143, 7
  %v145 = vsub.s32 0, %v144
  %v146 = vrot.slane %v142, %v145
  %v153 = vunpack.c.l.b16 %v21
  %v154 = vunpack.c.l.b16 %v22
  %v155 = vunpack.c.l.b16 %v23
  %v156 = vunpack.c.l.b16 %v24
  %v157 = vunpack.c.l.b16 %v25
  %v158 = vunpack.c.l.b16 %v26
  %v159 = vpack.c.b16 %v154, %v153
  %v160 = vpack.c.b16 %v156, %v155
  %v161 = vpack.c.b16 %v158, %v157
  %v163 = vsel %vm72, %v159, 0
  %v166 = vsel %vm72, %v160, 0
  %v169 = vsel %vm72, %v161, 0
  %171 = vmatprep.subr.bf16.mxu0 0
  %172 = vmatpush1.bf16.msra.mxu0 %v139
  %173 = vmatprep.subr.bf16.mxu0 0
  %174 = vmatpush1.bf16.msra.mxu0 %v140
  %175 = vmatprep.subr.bf16.mxu0 0
  %176 = vmatpush1.bf16.msra.mxu0 %v141
  %177 = vmatprep.subr.bf16.mxu0 0
  %178 = vmatpush1.bf16.msra.mxu0 0
  %179 = vmatprep.subr.bf16.mxu0 0
  %180 = vmatpush1.bf16.msra.mxu0 0
  %181 = vmatprep.subr.bf16.mxu0 0
  %182 = vmatpush1.bf16.msra.mxu0 0
  %183 = vmatprep.subr.bf16.mxu0 0
  %184 = vmatpush1.bf16.msra.mxu0 0
  %185 = vmatprep.subr.bf16.mxu0 0
  %186 = vmatpush1.bf16.msra.mxu0 0
  %187 = vmatprep.subr.bf16.mxu0 0
  %188 = vmatpush1.bf16.msra.mxu0 0
  %189 = vmatprep.subr.bf16.mxu0 0
  %190 = vmatpush1.bf16.msra.mxu0 0
  %191 = vmatprep.subr.bf16.mxu0 0
  %192 = vmatpush1.bf16.msra.mxu0 0
  %193 = vmatprep.subr.bf16.mxu0 0
  %194 = vmatpush1.bf16.msra.mxu0 0
  %195 = vmatprep.subr.bf16.mxu0 0
  %196 = vmatpush1.bf16.msra.mxu0 0
  %197 = vmatprep.subr.bf16.mxu0 0
  %198 = vmatpush1.bf16.msra.mxu0 0
  %199 = vmatprep.subr.bf16.mxu0 0
  %200 = vmatpush1.bf16.msra.mxu0 0
  %201 = vmatprep.subr.bf16.mxu0 0
  %202 = vmatpush1.bf16.msra.mxu0 0
  %203 = vmatprep.mubr.bf16.mxu0 0
  %204 = vmatmul.mubr.bf16.gmra.mrb[0].mxu0 %v163
  %v205 = vpop.f32.mrb[0].mxu0
  %v206 = vadd.f32 %v146, %v205
  %v207 = vpop.f32.mrb[0].mxu0
  %v208 = vpop.f32.mrb[0].mxu0
  %v209 = vadd.f32 %v146, %v208
  %v210 = vpop.f32.mrb[0].mxu0
  %211 = vmatprep.mubr.bf16.mxu0 0
  %212 = vmatmul.mubr.bf16.gmra.mrb[0].mxu0 %v166
  %v213 = vpop.f32.mrb[0].mxu0
  %v214 = vadd.f32 %v146, %v213
  %v215 = vpop.f32.mrb[0].mxu0
  %v216 = vpop.f32.mrb[0].mxu0
  %v217 = vadd.f32 %v146, %v216
  %v218 = vpop.f32.mrb[0].mxu0
  %219 = vmatprep.mubr.bf16.mxu0 0
  %220 = vmatmul.mubr.bf16.gmra.mrb[0].mxu0 %v169
  %v221 = vpop.f32.mrb[0].mxu0
  %v222 = vadd.f32 %v146, %v221
  %v223 = vpop.f32.mrb[0].mxu0
  %v224 = vpop.f32.mrb[0].mxu0
  %v225 = vadd.f32 %v146, %v224
  %v226 = vpop.f32.mrb[0].mxu0
  %227 = vdwg.mxu0
  %v228 = vmax.f32 %v206, 0.0
  %v229 = vmax.f32 %v209, 0.0
  %v230 = vmax.f32 %v214, 0.0
  %v231 = vmax.f32 %v217, 0.0
  %v232 = vmax.f32 %v222, 0.0
  %v233 = vmax.f32 %v225, 0.0
  %v234 = vpack.c.bf16 %v229, %v228
  %v235 = vpack.c.bf16 %v231, %v230
  %v236 = vpack.c.bf16 %v233, %v232
  %237 = vmatprep.subr.bf16.mxu0 0
  %238 = vmatpush1.bf16.msra.mxu0 %v234
  %239 = vmatprep.subr.bf16.mxu0 0
  %240 = vmatpush1.bf16.msra.mxu0 %v235
  %241 = vmatprep.subr.bf16.mxu0 0
  %242 = vmatpush1.bf16.msra.mxu0 %v236
  %243 = vmatprep.subr.bf16.mxu0 0
  %244 = vmatpush1.bf16.msra.mxu0 0
  %245 = vmatprep.subr.bf16.mxu0 0
  %246 = vmatpush1.bf16.msra.mxu0 0
  %247 = vmatprep.subr.bf16.mxu0 0
  %248 = vmatpush1.bf16.msra.mxu0 0
  %249 = vmatprep.subr.bf16.mxu0 0
  %250 = vmatpush1.bf16.msra.mxu0 0
  %251 = vmatprep.subr.bf16.mxu0 0
  %252 = vmatpush1.bf16.msra.mxu0 0
  %253 = vmatprep.subr.bf16.mxu0 0
  %254 = vmatpush1.bf16.msra.mxu0 0
  %255 = vmatprep.subr.bf16.mxu0 0
  %256 = vmatpush1.bf16.msra.mxu0 0
  %257 = vmatprep.subr.bf16.mxu0 0
  %258 = vmatpush1.bf16.msra.mxu0 0
  %259 = vmatprep.subr.bf16.mxu0 0
  %260 = vmatpush1.bf16.msra.mxu0 0
  %261 = vmatprep.subr.bf16.mxu0 0
  %262 = vmatpush1.bf16.msra.mxu0 0
  %263 = vmatprep.subr.bf16.mxu0 0
  %264 = vmatpush1.bf16.msra.mxu0 0
  %265 = vmatprep.subr.bf16.mxu0 0
  %266 = vmatpush1.bf16.msra.mxu0 0
  %267 = vmatprep.subr.bf16.mxu0 0
  %268 = vmatpush1.bf16.msra.mxu0 0
  %269 = vmatprep.mubr.bf16.mxu0 0
  %270 = vmatmul.mubr.bf16.gmra.mrb[0].mxu0 %v163
  %v271 = vpop.f32.mrb[0].mxu0
  %v272 = vadd.f32 0.0, %v271
  %v273 = vpop.f32.mrb[0].mxu0
  %v274 = vpop.f32.mrb[0].mxu0
  %v275 = vadd.f32 0.0, %v274
  %v276 = vpop.f32.mrb[0].mxu0
  %277 = vmatprep.mubr.bf16.mxu0 0
  %278 = vmatmul.mubr.bf16.gmra.mrb[0].mxu0 %v166
  %v279 = vpop.f32.mrb[0].mxu0
  %v280 = vadd.f32 0.0, %v279
  %v281 = vpop.f32.mrb[0].mxu0
  %v282 = vpop.f32.mrb[0].mxu0
  %v283 = vadd.f32 0.0, %v282
  %v284 = vpop.f32.mrb[0].mxu0
  %285 = vmatprep.mubr.bf16.mxu0 0
  %286 = vmatmul.mubr.bf16.gmra.mrb[0].mxu0 %v169
  %v287 = vpop.f32.mrb[0].mxu0
  %v288 = vadd.f32 0.0, %v287
  %v289 = vpop.f32.mrb[0].mxu0
  %v290 = vpop.f32.mrb[0].mxu0
  %v291 = vadd.f32 0.0, %v290
  %v292 = vpop.f32.mrb[0].mxu0
  %293 = vdwg.mxu0
  %v294 = vpack.c.bf16 %v275, %v272
  %v295 = vpack.c.bf16 %v283, %v280
  %v296 = vpack.c.bf16 %v291, %v288
  %v297 = vld [vmem:[%s4] sm:$0xf]
  %v298 = vld [vmem:[%s4 + $0x4] sm:$0xf]
  %v299 = vld [vmem:[%s4 + $0x8] sm:$0xf]
  %v300 = vld [vmem:[%s4 + $0xc] sm:$0xf]
  %v301 = vld [vmem:[%s4 + $0x10] sm:$0xf]
  %v302 = vld [vmem:[%s4 + $0x14] sm:$0xf]
  %v303 = vld [vmem:[%s4 + $0x18] sm:$0xf]
  %v304 = vld [vmem:[%s4 + $0x1c] sm:$0xf]
  %v305 = vld [vmem:[%s4 + $0x20] sm:$0xf]
  %v306 = vld [vmem:[%s4 + $0x24] sm:$0xf]
  %v307 = vld [vmem:[%s4 + $0x28] sm:$0xf]
  %v308 = vld [vmem:[%s4 + $0x2c] sm:$0xf]
  %v309 = vld [vmem:[%s4 + $0x30] sm:$0xf]
  %v310 = vld [vmem:[%s4 + $0x34] sm:$0xf]
  %v311 = vld [vmem:[%s4 + $0x38] sm:$0xf]
  %v312 = vld [vmem:[%s4 + $0x3c] sm:$0xf]
  %v313 = vld [vmem:[%s3 + $0x1] sm:$0x1]
  %v314 = vlaneseq
  %v315 = vshrl.u32 %v314, 7
  %v316 = vsub.s32 0, %v315
  %v317 = vrot.slane %v313, %v316
  %v334 = vunpack.c.l.b16 %v297
  %v335 = vunpack.c.l.b16 %v298
  %v336 = vunpack.c.l.b16 %v299
  %v337 = vunpack.c.l.b16 %v300
  %v338 = vunpack.c.l.b16 %v301
  %v339 = vunpack.c.l.b16 %v302
  %v340 = vunpack.c.l.b16 %v303
  %v341 = vunpack.c.l.b16 %v304
  %v342 = vunpack.c.l.b16 %v305
  %v343 = vunpack.c.l.b16 %v306
  %v344 = vunpack.c.l.b16 %v307
  %v345 = vunpack.c.l.b16 %v308
  %v346 = vunpack.c.l.b16 %v309
  %v347 = vunpack.c.l.b16 %v310
  %v348 = vunpack.c.l.b16 %v311
  %v349 = vunpack.c.l.b16 %v312
  %v350 = vpack.c.b16 %v335, %v334
  %v351 = vpack.c.b16 %v337, %v336
  %v352 = vpack.c.b16 %v339, %v338
  %v353 = vpack.c.b16 %v341, %v340
  %v354 = vpack.c.b16 %v343, %v342
  %v355 = vpack.c.b16 %v345, %v344
  %v356 = vpack.c.b16 %v347, %v346
  %v357 = vpack.c.b16 %v349, %v348
  %366 = vmatprep.subr.bf16.mxu0 0
  %367 = vmatpush1.bf16.msra.mxu0 %v350
  %368 = vmatprep.subr.bf16.mxu0 0
  %369 = vmatpush1.bf16.msra.mxu0 %v351
  %370 = vmatprep.subr.bf16.mxu0 0
  %371 = vmatpush1.bf16.msra.mxu0 %v352
  %372 = vmatprep.subr.bf16.mxu0 0
  %373 = vmatpush1.bf16.msra.mxu0 %v353
  %374 = vmatprep.subr.bf16.mxu0 0
  %375 = vmatpush1.bf16.msra.mxu0 %v354
  %376 = vmatprep.subr.bf16.mxu0 0
  %377 = vmatpush1.bf16.msra.mxu0 %v355
  %378 = vmatprep.subr.bf16.mxu0 0
  %379 = vmatpush1.bf16.msra.mxu0 %v356
  %380 = vmatprep.subr.bf16.mxu0 0
  %381 = vmatpush1.bf16.msra.mxu0 %v357
  %382 = vmatprep.subr.bf16.mxu0 0
  %383 = vmatpush1.bf16.msra.mxu0 0
  %384 = vmatprep.subr.bf16.mxu0 0
  %385 = vmatpush1.bf16.msra.mxu0 0
  %386 = vmatprep.subr.bf16.mxu0 0
  %387 = vmatpush1.bf16.msra.mxu0 0
  %388 = vmatprep.subr.bf16.mxu0 0
  %389 = vmatpush1.bf16.msra.mxu0 0
  %390 = vmatprep.subr.bf16.mxu0 0
  %391 = vmatpush1.bf16.msra.mxu0 0
  %392 = vmatprep.subr.bf16.mxu0 0
  %393 = vmatpush1.bf16.msra.mxu0 0
  %394 = vmatprep.subr.bf16.mxu0 0
  %395 = vmatpush1.bf16.msra.mxu0 0
  %396 = vmatprep.subr.bf16.mxu0 0
  %397 = vmatpush1.bf16.msra.mxu0 0
  %398 = vmatprep.mubr.bf16.mxu0 0
  %399 = vmatmul.mubr.bf16.gmra.mrb[0].mxu0 %v294
  %v400 = vpop.f32.mrb[0].mxu0
  %v401 = vadd.f32 %v317, %v400
  %v402 = vpop.f32.mrb[0].mxu0
  %v403 = vpop.f32.mrb[0].mxu0
  %v404 = vadd.f32 %v317, %v403
  %v405 = vpop.f32.mrb[0].mxu0
  %406 = vmatprep.mubr.bf16.mxu0 0
  %407 = vmatmul.mubr.bf16.gmra.mrb[0].mxu0 %v295
  %v408 = vpop.f32.mrb[0].mxu0
  %v409 = vadd.f32 %v317, %v408
  %v410 = vpop.f32.mrb[0].mxu0
  %v411 = vpop.f32.mrb[0].mxu0
  %v412 = vadd.f32 %v317, %v411
  %v413 = vpop.f32.mrb[0].mxu0
  %414 = vmatprep.mubr.bf16.mxu0 0
  %415 = vmatmul.mubr.bf16.gmra.mrb[0].mxu0 %v296
  %v416 = vpop.f32.mrb[0].mxu0
  %v417 = vadd.f32 %v317, %v416
  %v418 = vpop.f32.mrb[0].mxu0
  %v419 = vpop.f32.mrb[0].mxu0
  %v420 = vadd.f32 %v317, %v419
  %v421 = vpop.f32.mrb[0].mxu0
  %422 = vdwg.mxu0
  %423 = vst [vmem:[%s5] sm:$0xff] %v401
  %424 = vst [vmem:[%s5 + $0x8] sm:$0xff] %v404
  %425 = vst [vmem:[%s5 + $0x10] sm:$0xff] %v409
  %426 = vst [vmem:[%s5 + $0x18] sm:$0xff] %v412
  %427 = vst [vmem:[%s5 + $0x20] sm:$0xff] %v417
  %428 = vst [vmem:[%s5 + $0x28] sm:$0xff] %v420
  // Predicated region
  $region22: #{forward.1} parent=0 // pred_check
    _
  $region23: #{forward.1} parent=0 // pred_check_branch
    %430 = sbr.rel (0) target = $region25
  $region24: #{forward.1} parent=0 // pred_region
    _
  $region25: #{forward.1} parent=0 // pred_fallthru
    _
  // Predicated region
  $region26: #{forward.1} parent=0 // pred_check
    _
  $region27: #{forward.1} parent=0 // pred_check_branch
    %432 = sbr.rel (0) target = $region29
  $region28: #{forward.1} parent=0 // pred_region
    _
  $region29: #{forward.1} parent=0 // pred_fallthru
    _

</llo_original>
